<compile_context>
chip_gen: v6e
topology: v6e:2x2x1
jax: 0.10.0
libtpu: 0.0.40
codegen_flags: <defaults>
</compile_context>

<pallas_src>
import jax
import jax.numpy as jnp
from jax.experimental import pallas as pl
from jax.experimental.pallas import tpu as pltpu

VMEM_SPEC = pl.BlockSpec(memory_space=pltpu.MemorySpace.VMEM)
SMEM_SPEC = pl.BlockSpec(memory_space=pltpu.MemorySpace.SMEM)


# ----------------------------------------------------------------------------
# Kernel 1: gated blend of the two (V, E) embedding tables
#   out = a * g + (1 - a) * l        (a is exactly 0.0 or 1.0)
# Applied once to the small tables instead of the big (T, B, E) activations.
# ----------------------------------------------------------------------------
def _blend_kernel(a_ref, g_ref, l_ref, o_ref):
    a = a_ref[0]
    o_ref[...] = a * g_ref[...] + (1.0 - a) * l_ref[...]


def blend(a_scalar, g, l):
    return pl.pallas_call(
        _blend_kernel,
        out_shape=jax.ShapeDtypeStruct(g.shape, g.dtype),
        in_specs=[SMEM_SPEC, VMEM_SPEC, VMEM_SPEC],
        out_specs=VMEM_SPEC,
    )(a_scalar, g, l)


# ----------------------------------------------------------------------------
# Kernel 2: one LSTM layer over the whole sequence (PyTorch gate order i,f,g,o)
#   x_ref   : (T*Bp, Din)   time-major, batch padded to a multiple of 8
#   wih_ref : (Din, 4H)     fused-gate input weights (pre-transposed)
#   whh_ref : (H, 4H)       fused-gate recurrent weights (pre-transposed)
#   b_ref   : (1, 4H)       b_ih + b_hh
#   o_ref   : (T*Bp, H)
# The input projection is hoisted out of the serial loop as one big matmul
# (M = T*Bp, N = 4H); the recurrence only does the small h_prev @ Whh.
# ----------------------------------------------------------------------------
def _lstm_layer_kernel(x_ref, wih_ref, whh_ref, b_ref, o_ref,
                       xw_scr, h_scr, c_scr):
    Bp, H = h_scr.shape
    T = x_ref.shape[0] // Bp

    # Hoisted input projection: one large MXU matmul for all timesteps.
    xw_scr[...] = (jnp.dot(x_ref[...], wih_ref[...],
                           preferred_element_type=jnp.float32) + b_ref[...])
    h_scr[...] = jnp.zeros_like(h_scr)
    c_scr[...] = jnp.zeros_like(c_scr)

    def step(t, carry):
        row = pl.multiple_of(t * Bp, 8)          # aligned (Bp is a multiple of 8)
        gates = xw_scr[pl.ds(row, Bp), :] + jnp.dot(
            h_scr[...], whh_ref[...], preferred_element_type=jnp.float32)
        i_g = jax.nn.sigmoid(gates[:, 0 * H:1 * H])
        f_g = jax.nn.sigmoid(gates[:, 1 * H:2 * H])
        g_g = jnp.tanh(gates[:, 2 * H:3 * H])
        o_g = jax.nn.sigmoid(gates[:, 3 * H:4 * H])
        c_new = f_g * c_scr[...] + i_g * g_g
        h_new = o_g * jnp.tanh(c_new)
        c_scr[...] = c_new
        h_scr[...] = h_new
        o_ref[pl.ds(row, Bp), :] = h_new
        return carry

    # Unrolled so the LLO scheduler can overlap EUP / VPU / next-step MXU work.
    jax.lax.fori_loop(0, T, step, 0, unroll=True)


def lstm_layer(x2d, layer, Bp):
    # TODO(synk): for production T*Bp on v7x (64 MiB VMEM), add a batch-tile
    # grid axis (parallel) instead of keeping the whole layer resident.
    TB, _ = x2d.shape
    H = layer["whh"].shape[0]
    return pl.pallas_call(
        _lstm_layer_kernel,
        out_shape=jax.ShapeDtypeStruct((TB, H), jnp.float32),
        in_specs=[VMEM_SPEC] * 4,
        out_specs=VMEM_SPEC,
        scratch_shapes=[pltpu.VMEM((TB, 4 * H), jnp.float32),   # hoisted x@Wih
                        pltpu.VMEM((Bp, H), jnp.float32),       # h state
                        pltpu.VMEM((Bp, H), jnp.float32)],      # c state
    )(x2d, layer["wih"], layer["whh"], layer["b"])


# ----------------------------------------------------------------------------
# Kernel 3: fused head
#   h = select(a1, hg, hl); e = h @ W1[sel1] + b1[sel1];
#   logits = e @ W2[sel2] + b2[sel2]
# Grid = (row tiles, vocab column tiles).  The weight branch (global/local) is
# chosen by the scalar-prefetch indices inside the BlockSpec index_maps, so
# only the selected branch is DMA'd.  e is computed once per row tile (at
# column tile 0) and reused from VMEM scratch for all vocab column tiles.
# ----------------------------------------------------------------------------
def _head_kernel(sel_ref, hg_ref, hl_ref, w1_ref, b1_ref, w2_ref, b2_ref,
                 o_ref, e_scr):
    j = pl.program_id(1)

    @pl.when(j == 0)
    def _():
        use_global = sel_ref[0] == 0
        h = jnp.where(use_global, hg_ref[...], hl_ref[...])
        e = jnp.dot(h.astype(jnp.bfloat16), w1_ref[...],
                    preferred_element_type=jnp.float32) + b1_ref[...]
        e_scr[...] = e.astype(jnp.bfloat16)

    o_ref[...] = (jnp.dot(e_scr[...], w2_ref[...],
                          preferred_element_type=jnp.float32) + b2_ref[...])


def _pick_tile(dim, target, align):
    if dim <= target:
        return dim
    t = (target // align) * align
    while t >= align:
        if dim % t == 0:
            return t
        t -= align
    return dim


def head(sel, hg, hl, w1, b1, w2, b2, *, tm_target=256, tn_target=512):
    n_rows, hidden = hg.shape
    emb = w1.shape[-1]
    vocab = w2.shape[-1]
    tm = _pick_tile(n_rows, tm_target, 8)
    tn = _pick_tile(vocab, tn_target, 128)       # lane-dense vocab column tiles
    grid = (n_rows // tm, vocab // tn)

    grid_spec = pltpu.PrefetchScalarGridSpec(
        num_scalar_prefetch=1,
        grid=grid,
        in_specs=[
            pl.BlockSpec((tm, hidden), lambda i, j, sel: (i, 0)),        # hg
            pl.BlockSpec((tm, hidden), lambda i, j, sel: (i, 0)),        # hl
            pl.BlockSpec((None, hidden, emb),
                         lambda i, j, sel: (sel[1], 0, 0)),              # W1[sel1]
            pl.BlockSpec((None, 1, emb),
                         lambda i, j, sel: (sel[1], 0, 0)),              # b1[sel1]
            pl.BlockSpec((None, emb, tn),
                         lambda i, j, sel: (sel[2], 0, j)),              # W2[sel2]
            pl.BlockSpec((None, 1, tn),
                         lambda i, j, sel: (sel[2], 0, j)),              # b2[sel2]
        ],
        out_specs=pl.BlockSpec((tm, tn), lambda i, j, sel: (i, j)),
        scratch_shapes=[pltpu.VMEM((tm, emb), jnp.bfloat16)],
    )
    return pl.pallas_call(
        _head_kernel,
        out_shape=jax.ShapeDtypeStruct((n_rows, vocab), jnp.float32),
        grid_spec=grid_spec,
        compiler_params=pltpu.CompilerParams(
            dimension_semantics=("parallel", "arbitrary")),
    )(sel, hg, hl, w1, b1, w2, b2)


# ----------------------------------------------------------------------------
# Deterministic synthetic parameter init (shapes follow the nn.Module).
# ----------------------------------------------------------------------------
def init_params(key, vocab_size, embedding_size, hidden_size, num_layers):
    keys = iter(jax.random.split(key, 64))

    def unif(shape, scale):
        return jax.random.uniform(next(keys), shape, jnp.float32, -scale, scale)

    params = {}
    emb_g = 0.1 * jax.random.normal(next(keys), (vocab_size, embedding_size), jnp.float32)
    emb_l = 0.1 * jax.random.normal(next(keys), (vocab_size, embedding_size), jnp.float32)
    params["emb_g"] = emb_g.at[0].set(0.0)   # padding_idx=0
    params["emb_l"] = emb_l.at[0].set(0.0)

    k_h = 1.0 / (hidden_size ** 0.5)
    for name in ("g", "l"):
        layers = []
        for layer in range(num_layers):
            din = embedding_size if layer == 0 else hidden_size
            wih = unif((4 * hidden_size, din), k_h)          # PyTorch (4H, Din)
            whh = unif((4 * hidden_size, hidden_size), k_h)  # PyTorch (4H, H)
            bih = unif((4 * hidden_size,), k_h)
            bhh = unif((4 * hidden_size,), k_h)
            layers.append({
                "wih": wih.T,                                 # (Din, 4H) fused i,f,g,o
                "whh": whh.T,                                 # (H, 4H)
                "b": (bih + bhh).reshape(1, 4 * hidden_size),
            })
        params[f"lstm_{name}"] = layers

    k1 = 1.0 / (hidden_size ** 0.5)
    k2 = 1.0 / (embedding_size ** 0.5)
    w1_g = unif((embedding_size, hidden_size), k1); b1_g = unif((embedding_size,), k1)
    w1_l = unif((embedding_size, hidden_size), k1); b1_l = unif((embedding_size,), k1)
    w2_g = unif((vocab_size, embedding_size), k2); b2_g = unif((vocab_size,), k2)
    w2_l = unif((vocab_size, embedding_size), k2); b2_l = unif((vocab_size,), k2)
    # Stacked [global, local]; weights bf16 at the MXU input, biases/acc f32.
    params["w1"] = jnp.stack([w1_g.T, w1_l.T]).astype(jnp.bfloat16)        # (2, H, E)
    params["b1"] = jnp.stack([b1_g, b1_l]).reshape(2, 1, embedding_size)
    params["w2"] = jnp.stack([w2_g.T, w2_l.T]).astype(jnp.bfloat16)        # (2, E, V)
    params["b2"] = jnp.stack([b2_g, b2_l]).reshape(2, 1, vocab_size)
    return params


# ----------------------------------------------------------------------------
# Forward pass (glue + Pallas kernels)
# ----------------------------------------------------------------------------
def forward(params, x_tokens, alpha, gumbel_key, tau=1.0):
    # flatten_parameters() is a CUDA-memory no-op -> nothing to do.
    # Gumbel-softmax block selection (RNG + argmax: plain JAX glue).
    gumbel = jax.random.gumbel(gumbel_key, alpha.shape, jnp.float32)
    y_soft = jax.nn.softmax((alpha + gumbel) / tau, axis=-1)
    A = jnp.argmax(y_soft, axis=1)                        # (4,), values in {0,1}
    a0 = A[0:1].astype(jnp.float32)
    # A[k] == 1 -> global branch -> stacked index 0; A[k] == 0 -> local -> 1.
    sel = (1 - A[1:4]).astype(jnp.int32)                  # (3,)

    # Blend the two embedding tables once (exact for a0 in {0,1}), then gather.
    emb_table = blend(a0, params["emb_g"], params["emb_l"])   # (V, E)

    # Pad batch to a multiple of 8 (f32 sublane) with padding token 0 (its
    # embedding row is exactly zero), gather straight into time-major layout.
    B, T = x_tokens.shape
    Bp = max(8, -(-B // 8) * 8)
    x_pad = jnp.zeros((Bp, T), x_tokens.dtype).at[:B].set(x_tokens)
    tok_tm = x_pad.T.reshape(T * Bp)                      # time-major token ids
    x_e = jnp.take(emb_table, tok_tm, axis=0)             # (T*Bp, E)

    hg = x_e
    for layer in params["lstm_g"]:
        hg = lstm_layer(hg, layer, Bp)
    hl = x_e
    for layer in params["lstm_l"]:
        hl = lstm_layer(hl, layer, Bp)

    # Fused: a1-select + linear1 + linear2 (tiled over rows x vocab columns).
    logits = head(sel, hg, hl, params["w1"], params["b1"],
                  params["w2"], params["b2"])             # (T*Bp, V)

    V = logits.shape[-1]
    logits = logits.reshape(T, Bp, V)[:, :B, :]           # drop batch padding
    # torch.transpose(logits, 1, 2) on [B, T, V]  ->  [B, V, T]
    return jnp.transpose(logits, (1, 2, 0))


if __name__ == "__main__":
    vocab_size, embedding_size, hidden_size, num_layers = 64, 16, 32, 2
    B, T = 2, 8

    key = jax.random.PRNGKey(0)
    k_params, k_x, k_alpha, k_gumbel = jax.random.split(key, 4)

    params = init_params(k_params, vocab_size, embedding_size, hidden_size, num_layers)
    x = jax.random.randint(k_x, (B, T), 0, vocab_size, jnp.int32)
    alpha = jax.random.normal(k_alpha, (4, 2), jnp.float32)

    out = forward(params, x, alpha, k_gumbel)
    out = jax.block_until_ready(out)
    assert out.shape == (B, vocab_size, T), out.shape
    assert out.dtype == jnp.float32
    print("KERNEL_OK")
</pallas_src>

<mosaic_0001>
module attributes {stable_mosaic.version = 11 : i64} {
  func.func @_blend_kernel(%arg0: memref<1xf32, #tpu.memory_space<smem>>, %arg1: memref<64x16xf32, #tpu.memory_space<vmem>>, %arg2: memref<64x16xf32, #tpu.memory_space<vmem>>, %arg3: memref<64x16xf32, #tpu.memory_space<vmem>>) attributes {dimension_semantics = [], scalar_prefetch = 0 : i64, scratch_operands = 0 : i64, tpu.core_type = #tpu.core_type<tc>} {
    %c0 = arith.constant 0 : index
    %0 = memref.load %arg0[%c0] : memref<1xf32, #tpu.memory_space<smem>>
    %c0_0 = arith.constant 0 : index
    %c0_1 = arith.constant 0 : index
    %1 = vector.load %arg1[%c0_0, %c0_1] : memref<64x16xf32, #tpu.memory_space<vmem>>, vector<64x16xf32>
    %2 = vector.broadcast %0 : f32 to vector<64x16xf32>
    %3 = arith.mulf %2, %1 : vector<64x16xf32>
    %cst = arith.constant 1.000000e+00 : f32
    %4 = arith.subf %cst, %0 : f32
    %c0_2 = arith.constant 0 : index
    %c0_3 = arith.constant 0 : index
    %5 = vector.load %arg2[%c0_2, %c0_3] : memref<64x16xf32, #tpu.memory_space<vmem>>, vector<64x16xf32>
    %6 = vector.broadcast %4 : f32 to vector<64x16xf32>
    %7 = arith.mulf %6, %5 : vector<64x16xf32>
    %8 = arith.addf %3, %7 : vector<64x16xf32>
    %c0_4 = arith.constant 0 : index
    %c0_5 = arith.constant 0 : index
    %9 = vector.load %arg3[%c0_4, %c0_5] : memref<64x16xf32, #tpu.memory_space<vmem>>, vector<64x16xf32>
    tpu.vector_store %arg3[%c0_4, %c0_5], %8 {strides = array<i32>} : memref<64x16xf32, #tpu.memory_space<vmem>>, vector<64x16xf32>,
    return
  }
}

</mosaic_0001>

<llo_original>
// kernel: tpu_custom_call.1
$region0: #{tpu_custom_call.1}
  #allocation0 [shape = 'u32[]', space=smem, size = 0x4, offset = 0x4, fixed_abs, tag = 'smem constant byte address 0x4 - core index']
  #allocation1 [shape = 'u32[144,128]{1,0:T(1,128)}', space=vmem, size = 0x12000, scoped, tag = 'internal scratch']
  #allocation2 [shape = 'f32[1]{0:T(128)S(6)}', space=smem, size = 0x200, scoped, tag = 'scoped memory for tpu_custom_call.1']
  %s0 = inlined_call_operand.<no memory space> [shape: f32[1], index: 0, kind: input, shape index: {}]
  %s1 = inlined_call_operand.vmem [shape: f32[64,16], index: 1, kind: input, shape index: {}]
  %s2 = inlined_call_operand.vmem [shape: f32[64,16], index: 2, kind: input, shape index: {}]
  %s3 = inlined_call_operand.vmem [shape: f32[64,16], index: 3, kind: output, shape index: {}]
  %s4 = sld [smem:[#allocation0]]
  $region22: #{tpu_custom_call.1} parent=0
    _
  %s6 = ssub.s32 1, %s4
  %s7 = scalar_select 0, %s6, %s4
  %8 = sst [smem:[#allocation2]] %s0
  // Predicated region
  $region2: #{tpu_custom_call.1} parent=0 // pred_check
    _
  $region3: #{tpu_custom_call.1} parent=0 // pred_check_branch
    %10 = sbr.rel (0) target = $region5
  $region4: #{tpu_custom_call.1} parent=0 // pred_region
    _
  $region5: #{tpu_custom_call.1} parent=0 // pred_fallthru
    _
  // Predicated region
  $region6: #{tpu_custom_call.1} parent=0 // pred_check
    _
  $region7: #{tpu_custom_call.1} parent=0 // pred_check_branch
    %12 = sbr.rel (0) target = $region9
  $region8: #{tpu_custom_call.1} parent=0 // pred_region
    _
  $region9: #{tpu_custom_call.1} parent=0 // pred_fallthru
    _
  // Predicated region
  $region10: #{tpu_custom_call.1} parent=0 // pred_check
    _
  $region11: #{tpu_custom_call.1} parent=0 // pred_check_branch
    %14 = sbr.rel (0) target = $region13
  $region12: #{tpu_custom_call.1} parent=0 // pred_region
    _
  $region13: #{tpu_custom_call.1} parent=0 // pred_fallthru
    _
  %s15 = sld [smem:[#allocation2]]
  %v16 = vld [vmem:[%s1] sm:$0xff]
  %v17 = vld [vmem:[%s1 + $0x8] sm:$0xff]
  %v18 = vld [vmem:[%s1 + $0x10] sm:$0xff]
  %v19 = vld [vmem:[%s1 + $0x18] sm:$0xff]
  %v20 = vld [vmem:[%s1 + $0x20] sm:$0xff]
  %v21 = vld [vmem:[%s1 + $0x28] sm:$0xff]
  %v22 = vld [vmem:[%s1 + $0x30] sm:$0xff]
  %v23 = vld [vmem:[%s1 + $0x38] sm:$0xff]
  %v24 = vstv %s15
  %v25 = vmul.f32 %v24, %v16
  %v26 = vmul.f32 %v24, %v17
  %v27 = vmul.f32 %v24, %v18
  %v28 = vmul.f32 %v24, %v19
  %v29 = vmul.f32 %v24, %v20
  %v30 = vmul.f32 %v24, %v21
  %v31 = vmul.f32 %v24, %v22
  %v32 = vmul.f32 %v24, %v23
  %s33 = ssub.f32 1.0, %s15
  %v34 = vld [vmem:[%s2] sm:$0xff]
  %v35 = vld [vmem:[%s2 + $0x8] sm:$0xff]
  %v36 = vld [vmem:[%s2 + $0x10] sm:$0xff]
  %v37 = vld [vmem:[%s2 + $0x18] sm:$0xff]
  %v38 = vld [vmem:[%s2 + $0x20] sm:$0xff]
  %v39 = vld [vmem:[%s2 + $0x28] sm:$0xff]
  %v40 = vld [vmem:[%s2 + $0x30] sm:$0xff]
  %v41 = vld [vmem:[%s2 + $0x38] sm:$0xff]
  %v42 = vstv %s33
  %v43 = vmul.f32 %v42, %v34
  %v44 = vmul.f32 %v42, %v35
  %v45 = vmul.f32 %v42, %v36
  %v46 = vmul.f32 %v42, %v37
  %v47 = vmul.f32 %v42, %v38
  %v48 = vmul.f32 %v42, %v39
  %v49 = vmul.f32 %v42, %v40
  %v50 = vmul.f32 %v42, %v41
  %v51 = vadd.f32 %v25, %v43
  %v52 = vadd.f32 %v26, %v44
  %v53 = vadd.f32 %v27, %v45
  %v54 = vadd.f32 %v28, %v46
  %v55 = vadd.f32 %v29, %v47
  %v56 = vadd.f32 %v30, %v48
  %v57 = vadd.f32 %v31, %v49
  %v58 = vadd.f32 %v32, %v50
  %vm59 = vcmask 130048
  %60 = vst.msk [vmem:[%s3] sm:$0xff] %vm59, %v51
  %61 = vst.msk [vmem:[%s3 + $0x8] sm:$0xff] %vm59, %v52
  %62 = vst.msk [vmem:[%s3 + $0x10] sm:$0xff] %vm59, %v53
  %63 = vst.msk [vmem:[%s3 + $0x18] sm:$0xff] %vm59, %v54
  %64 = vst.msk [vmem:[%s3 + $0x20] sm:$0xff] %vm59, %v55
  %65 = vst.msk [vmem:[%s3 + $0x28] sm:$0xff] %vm59, %v56
  %66 = vst.msk [vmem:[%s3 + $0x30] sm:$0xff] %vm59, %v57
  %67 = vst.msk [vmem:[%s3 + $0x38] sm:$0xff] %vm59, %v58
  // Predicated region
  $region14: #{tpu_custom_call.1} parent=0 // pred_check
    _
  $region15: #{tpu_custom_call.1} parent=0 // pred_check_branch
    %69 = sbr.rel (0) target = $region17
  $region16: #{tpu_custom_call.1} parent=0 // pred_region
    _
  $region17: #{tpu_custom_call.1} parent=0 // pred_fallthru
    _
  // Predicated region
  $region18: #{tpu_custom_call.1} parent=0 // pred_check
    _
  $region19: #{tpu_custom_call.1} parent=0 // pred_check_branch
    %71 = sbr.rel (0) target = $region21
  $region20: #{tpu_custom_call.1} parent=0 // pred_region
    _
  $region21: #{tpu_custom_call.1} parent=0 // pred_fallthru
    _

</llo_original>
